<compile_context>
chip_gen: v6e
topology: v6e:2x2x1
jax: 0.10.0
libtpu: 0.0.40
codegen_flags: <defaults>
</compile_context>

<pallas_src>
import math

import jax
import jax.numpy as jnp
from jax.experimental import pallas as pl
from jax.experimental.pallas import tpu as pltpu

LANE = 128


def _round_up(n, m):
    return ((n + m - 1) // m) * m


def mlp_kernel(x_ref, w1_ref, b1_ref, w2_ref, b2_ref,
               w3_ref, b3_ref, w4_ref, b4_ref, o_ref):
    # x_ref: (8, bm) bf16 -- features on sublanes, batch on lanes (lane-dense).
    x = x_ref[...]

    # Layer 1: (64,8) @ (8,bm) -> (64,bm), f32 accumulate; bias + ReLU in f32.
    h = jnp.dot(w1_ref[...], x, preferred_element_type=jnp.float32)
    h = jnp.maximum(h + b1_ref[...], 0.0)

    # Layer 2: (32,64) @ (64,bm) -> (32,bm).
    h = jnp.dot(w2_ref[...], h.astype(jnp.bfloat16),
                preferred_element_type=jnp.float32)
    h = jnp.maximum(h + b2_ref[...], 0.0)

    # Layer 3: (16,32) @ (32,bm) -> (16,bm).
    h = jnp.dot(w3_ref[...], h.astype(jnp.bfloat16),
                preferred_element_type=jnp.float32)
    h = jnp.maximum(h + b3_ref[...], 0.0)                     # (16, bm) f32

    # Layer 4 (Linear(16,1)) on the VPU/XLU: broadcast-multiply by w4 (16,1)
    # and reduce over 16 sublanes -> lane-dense (1, bm) output.
    o = jnp.sum(w4_ref[...] * h, axis=0, keepdims=True) + b4_ref[...]
    o_ref[...] = o.astype(o_ref.dtype)


def housing_model_forward(x, params, *, bm=None):
    """x: (B, 8) float32. params in PyTorch layout (w: (out,in), b: (out,)).
    Returns (B, 1) float32."""
    B, F = x.shape
    assert F == 8

    # Lane-dense batch tile: multiple of 128, capped at 2048 columns.
    # VMEM use per step: x tile 8*bm*2B + out tile bm*4B (double-buffered)
    # plus ~13 KB of resident weights -> far below even v7x's 64 MiB.
    if bm is None:
        bm = min(2048, _round_up(B, LANE))
    else:
        bm = _round_up(max(bm, LANE), LANE)
    B_pad = _round_up(B, bm)
    grid = (B_pad // bm,)

    # Batch-on-lanes input: (8, B_pad), padded ragged tail, cast to bf16.
    xT = jnp.transpose(x)
    if B_pad != B:
        xT = jnp.pad(xT, ((0, 0), (0, B_pad - B)))
    xT = xT.astype(jnp.bfloat16)

    # Weights: PyTorch (out, in) layout is exactly what W @ X needs.
    w1 = params["w1"].astype(jnp.bfloat16)                       # (64, 8)
    w2 = params["w2"].astype(jnp.bfloat16)                       # (32, 64)
    w3 = params["w3"].astype(jnp.bfloat16)                       # (16, 32)
    w4 = params["w4"].reshape(16, 1).astype(jnp.float32)         # VPU reduce weights
    b1 = params["b1"].reshape(-1, 1).astype(jnp.float32)         # (64, 1)
    b2 = params["b2"].reshape(-1, 1).astype(jnp.float32)         # (32, 1)
    b3 = params["b3"].reshape(-1, 1).astype(jnp.float32)         # (16, 1)
    b4 = params["b4"].reshape(1, 1).astype(jnp.float32)          # (1, 1)

    # Grid-invariant whole-array VMEM residents (no per-step revisit / DMA).
    resident = pl.BlockSpec(memory_space=pltpu.MemorySpace.VMEM)

    out = pl.pallas_call(
        mlp_kernel,
        out_shape=jax.ShapeDtypeStruct((1, B_pad), jnp.float32),
        grid=grid,
        in_specs=[
            pl.BlockSpec((8, bm), lambda i: (0, i)),   # x tile: lane-dense batch
            resident, resident,   # w1, b1
            resident, resident,   # w2, b2
            resident, resident,   # w3, b3
            resident, resident,   # w4, b4
        ],
        out_specs=pl.BlockSpec((1, bm), lambda i: (0, i)),
        compiler_params=pltpu.CompilerParams(
            dimension_semantics=("parallel",),   # batch axis shards across v7x TCs
        ),
    )(xT, w1, b1, w2, b2, w3, b3, w4, b4)

    return out[0, :B].reshape(B, 1)


def init_params(key):
    """Deterministic Kaiming-uniform weights (nonlinearity='relu'), zero biases.
    PyTorch layout: w is (out_features, in_features), b is (out_features,)."""
    dims = [(64, 8), (32, 64), (16, 32), (1, 16)]   # (out, in)
    params = {}
    keys = jax.random.split(key, len(dims))
    for idx, ((fan_out, fan_in), k) in enumerate(zip(dims, keys), start=1):
        gain = math.sqrt(2.0)                       # relu gain
        bound = gain * math.sqrt(3.0 / fan_in)      # kaiming_uniform bound
        params[f"w{idx}"] = jax.random.uniform(
            k, (fan_out, fan_in), jnp.float32, -bound, bound)
        params[f"b{idx}"] = jnp.zeros((fan_out,), jnp.float32)
    return params


def reference_forward(x, params):
    """Pure-JAX reference mirroring the kernel's precision choices
    (bf16 matmul operands, f32 accumulate, f32 bias/ReLU, f32 final layer)."""
    h = x.astype(jnp.bfloat16)
    for i in (1, 2, 3):
        w = params[f"w{i}"].astype(jnp.bfloat16)
        h = jnp.dot(h, w.T, preferred_element_type=jnp.float32)
        h = jnp.maximum(h + params[f"b{i}"], 0.0)
        if i < 3:
            h = h.astype(jnp.bfloat16)
    return jnp.dot(h, params["w4"].T) + params["b4"]


if __name__ == "__main__":
    key = jax.random.PRNGKey(0)
    k_params, k_x1, k_x2 = jax.random.split(key, 3)

    params = init_params(k_params)

    # Small demo batch (B=16): single 128-wide lane-dense tile, grid=(1,).
    x_small = jax.random.normal(k_x1, (16, 8), jnp.float32)
    out_small = jax.block_until_ready(housing_model_forward(x_small, params))
    ref_small = reference_forward(x_small, params)
    assert out_small.shape == (16, 1)
    assert jnp.allclose(out_small, ref_small, atol=1e-2, rtol=1e-2)

    # Ragged batch (B=300) with bm=128: exercises padding + a 3-step grid.
    x_ragged = jax.random.normal(k_x2, (300, 8), jnp.float32)
    out_ragged = jax.block_until_ready(
        housing_model_forward(x_ragged, params, bm=128))
    ref_ragged = reference_forward(x_ragged, params)
    assert out_ragged.shape == (300, 1)
    assert jnp.allclose(out_ragged, ref_ragged, atol=1e-2, rtol=1e-2)

    print("KERNEL_OK")
</pallas_src>

<mosaic_0001>
module attributes {stable_mosaic.version = 11 : i64} {
  func.func @mlp_kernel(%arg0: i32, %arg1: memref<8x128xbf16, #tpu.memory_space<vmem>>, %arg2: memref<64x8xbf16, #tpu.memory_space<vmem>>, %arg3: memref<64x1xf32, #tpu.memory_space<vmem>>, %arg4: memref<32x64xbf16, #tpu.memory_space<vmem>>, %arg5: memref<32x1xf32, #tpu.memory_space<vmem>>, %arg6: memref<16x32xbf16, #tpu.memory_space<vmem>>, %arg7: memref<16x1xf32, #tpu.memory_space<vmem>>, %arg8: memref<16x1xf32, #tpu.memory_space<vmem>>, %arg9: memref<1x1xf32, #tpu.memory_space<vmem>>, %arg10: memref<1x128xf32, #tpu.memory_space<vmem>>) attributes {dimension_semantics = [#tpu.dimension_semantics<parallel>], iteration_bounds = array<i64: 1>, scalar_prefetch = 0 : i64, scratch_operands = 0 : i64, tpu.core_type = #tpu.core_type<tc>, window_params = [{transform_indices = @transform_0, window_bounds = array<i64: 8, 128>}, {pipeline_mode = #tpu.pipeline_mode<synchronous>, transform_indices = @transform_1, window_bounds = array<i64: 64, 8>}, {pipeline_mode = #tpu.pipeline_mode<synchronous>, transform_indices = @transform_2, window_bounds = array<i64: 64, 1>}, {pipeline_mode = #tpu.pipeline_mode<synchronous>, transform_indices = @transform_3, window_bounds = array<i64: 32, 64>}, {pipeline_mode = #tpu.pipeline_mode<synchronous>, transform_indices = @transform_4, window_bounds = array<i64: 32, 1>}, {pipeline_mode = #tpu.pipeline_mode<synchronous>, transform_indices = @transform_5, window_bounds = array<i64: 16, 32>}, {pipeline_mode = #tpu.pipeline_mode<synchronous>, transform_indices = @transform_6, window_bounds = array<i64: 16, 1>}, {pipeline_mode = #tpu.pipeline_mode<synchronous>, transform_indices = @transform_7, window_bounds = array<i64: 16, 1>}, {pipeline_mode = #tpu.pipeline_mode<synchronous>, transform_indices = @transform_8, window_bounds = array<i64: 1, 1>}, {transform_indices = @transform_9, window_bounds = array<i64: 1, 128>}]} {
    %c0 = arith.constant 0 : index
    %c0_0 = arith.constant 0 : index
    %0 = vector.load %arg1[%c0, %c0_0] : memref<8x128xbf16, #tpu.memory_space<vmem>>, vector<8x128xbf16>
    %c0_1 = arith.constant 0 : index
    %c0_2 = arith.constant 0 : index
    %1 = vector.load %arg2[%c0_1, %c0_2] : memref<64x8xbf16, #tpu.memory_space<vmem>>, vector<64x8xbf16>
    %cst = arith.constant dense<0.000000e+00> : vector<64x128xf32>
    %2 = tpu.matmul %1, %0, %cst {dimension_numbers = #tpu.dot_dimension_numbers<[1], [0], [0], [1], [0, 0, 1, 1], [], []>} : vector<64x8xbf16>, vector<8x128xbf16>, vector<64x128xf32> -> vector<64x128xf32>
    %c0_3 = arith.constant 0 : index
    %c0_4 = arith.constant 0 : index
    %3 = vector.load %arg3[%c0_3, %c0_4] : memref<64x1xf32, #tpu.memory_space<vmem>>, vector<64x1xf32>
    %4 = vector.broadcast %3 : vector<64x1xf32> to vector<64x128xf32>
    %5 = arith.addf %2, %4 : vector<64x128xf32>
    %cst_5 = arith.constant 0.000000e+00 : f32
    %6 = vector.broadcast %cst_5 : f32 to vector<64x128xf32>
    %7 = arith.maximumf %5, %6 : vector<64x128xf32>
    %c0_6 = arith.constant 0 : index
    %c0_7 = arith.constant 0 : index
    %8 = vector.load %arg4[%c0_6, %c0_7] : memref<32x64xbf16, #tpu.memory_space<vmem>>, vector<32x64xbf16>
    %9 = arith.truncf %7 : vector<64x128xf32> to vector<64x128xbf16>
    %cst_8 = arith.constant dense<0.000000e+00> : vector<32x128xf32>
    %10 = tpu.matmul %8, %9, %cst_8 {dimension_numbers = #tpu.dot_dimension_numbers<[1], [0], [0], [1], [0, 0, 1, 1], [], []>} : vector<32x64xbf16>, vector<64x128xbf16>, vector<32x128xf32> -> vector<32x128xf32>
    %c0_9 = arith.constant 0 : index
    %c0_10 = arith.constant 0 : index
    %11 = vector.load %arg5[%c0_9, %c0_10] : memref<32x1xf32, #tpu.memory_space<vmem>>, vector<32x1xf32>
    %12 = vector.broadcast %11 : vector<32x1xf32> to vector<32x128xf32>
    %13 = arith.addf %10, %12 : vector<32x128xf32>
    %cst_11 = arith.constant 0.000000e+00 : f32
    %14 = vector.broadcast %cst_11 : f32 to vector<32x128xf32>
    %15 = arith.maximumf %13, %14 : vector<32x128xf32>
    %c0_12 = arith.constant 0 : index
    %c0_13 = arith.constant 0 : index
    %16 = vector.load %arg6[%c0_12, %c0_13] : memref<16x32xbf16, #tpu.memory_space<vmem>>, vector<16x32xbf16>
    %17 = arith.truncf %15 : vector<32x128xf32> to vector<32x128xbf16>
    %cst_14 = arith.constant dense<0.000000e+00> : vector<16x128xf32>
    %18 = tpu.matmul %16, %17, %cst_14 {dimension_numbers = #tpu.dot_dimension_numbers<[1], [0], [0], [1], [0, 0, 1, 1], [], []>} : vector<16x32xbf16>, vector<32x128xbf16>, vector<16x128xf32> -> vector<16x128xf32>
    %c0_15 = arith.constant 0 : index
    %c0_16 = arith.constant 0 : index
    %19 = vector.load %arg7[%c0_15, %c0_16] : memref<16x1xf32, #tpu.memory_space<vmem>>, vector<16x1xf32>
    %20 = vector.broadcast %19 : vector<16x1xf32> to vector<16x128xf32>
    %21 = arith.addf %18, %20 : vector<16x128xf32>
    %cst_17 = arith.constant 0.000000e+00 : f32
    %22 = vector.broadcast %cst_17 : f32 to vector<16x128xf32>
    %23 = arith.maximumf %21, %22 : vector<16x128xf32>
    %c0_18 = arith.constant 0 : index
    %c0_19 = arith.constant 0 : index
    %24 = vector.load %arg8[%c0_18, %c0_19] : memref<16x1xf32, #tpu.memory_space<vmem>>, vector<16x1xf32>
    %25 = vector.broadcast %24 : vector<16x1xf32> to vector<16x128xf32>
    %26 = arith.mulf %25, %23 : vector<16x128xf32>
    %cst_20 = arith.constant dense<0.000000e+00> : vector<128xf32>
    %27 = vector.multi_reduction <add>, %26, %cst_20 [0] : vector<16x128xf32> to vector<128xf32>
    %28 = vector.shape_cast %27 : vector<128xf32> to vector<1x128xf32>
    %c0_21 = arith.constant 0 : index
    %c0_22 = arith.constant 0 : index
    %29 = vector.load %arg9[%c0_21, %c0_22] : memref<1x1xf32, #tpu.memory_space<vmem>>, vector<1x1xf32>
    %30 = vector.broadcast %29 : vector<1x1xf32> to vector<1x128xf32>
    %31 = arith.addf %28, %30 : vector<1x128xf32>
    %c0_23 = arith.constant 0 : index
    %c0_24 = arith.constant 0 : index
    %32 = vector.load %arg10[%c0_23, %c0_24] : memref<1x128xf32, #tpu.memory_space<vmem>>, vector<1x128xf32>
    tpu.vector_store %arg10[%c0_23, %c0_24], %31 {strides = array<i32>} : memref<1x128xf32, #tpu.memory_space<vmem>>, vector<1x128xf32>,
    return
  }
  func.func @transform_0(%arg0: i32) -> (i32, i32) {
    %c0_i32 = arith.constant 0 : i32
    %c0_i32_0 = arith.constant 0 : i32
    return %c0_i32, %arg0 : i32, i32
  }
  func.func @transform_1(%arg0: i32) -> (i32, i32) {
    %c0_i32 = arith.constant 0 : i32
    %c0_i32_0 = arith.constant 0 : i32
    %c0_i32_1 = arith.constant 0 : i32
    return %c0_i32, %c0_i32_0 : i32, i32
  }
  func.func @transform_2(%arg0: i32) -> (i32, i32) {
    %c0_i32 = arith.constant 0 : i32
    %c0_i32_0 = arith.constant 0 : i32
    %c0_i32_1 = arith.constant 0 : i32
    return %c0_i32, %c0_i32_0 : i32, i32
  }
  func.func @transform_3(%arg0: i32) -> (i32, i32) {
    %c0_i32 = arith.constant 0 : i32
    %c0_i32_0 = arith.constant 0 : i32
    %c0_i32_1 = arith.constant 0 : i32
    return %c0_i32, %c0_i32_0 : i32, i32
  }
  func.func @transform_4(%arg0: i32) -> (i32, i32) {
    %c0_i32 = arith.constant 0 : i32
    %c0_i32_0 = arith.constant 0 : i32
    %c0_i32_1 = arith.constant 0 : i32
    return %c0_i32, %c0_i32_0 : i32, i32
  }
  func.func @transform_5(%arg0: i32) -> (i32, i32) {
    %c0_i32 = arith.constant 0 : i32
    %c0_i32_0 = arith.constant 0 : i32
    %c0_i32_1 = arith.constant 0 : i32
    return %c0_i32, %c0_i32_0 : i32, i32
  }
  func.func @transform_6(%arg0: i32) -> (i32, i32) {
    %c0_i32 = arith.constant 0 : i32
    %c0_i32_0 = arith.constant 0 : i32
    %c0_i32_1 = arith.constant 0 : i32
    return %c0_i32, %c0_i32_0 : i32, i32
  }
  func.func @transform_7(%arg0: i32) -> (i32, i32) {
    %c0_i32 = arith.constant 0 : i32
    %c0_i32_0 = arith.constant 0 : i32
    %c0_i32_1 = arith.constant 0 : i32
    return %c0_i32, %c0_i32_0 : i32, i32
  }
  func.func @transform_8(%arg0: i32) -> (i32, i32) {
    %c0_i32 = arith.constant 0 : i32
    %c0_i32_0 = arith.constant 0 : i32
    %c0_i32_1 = arith.constant 0 : i32
    return %c0_i32, %c0_i32_0 : i32, i32
  }
  func.func @transform_9(%arg0: i32) -> (i32, i32) {
    %c0_i32 = arith.constant 0 : i32
    %c0_i32_0 = arith.constant 0 : i32
    return %c0_i32, %arg0 : i32, i32
  }
}

</mosaic_0001>

<llo_original>
// kernel: tpu_custom_call.1
$region0: #{tpu_custom_call.1}
  #allocation0 [shape = 'u32[]', space=smem, size = 0x4, offset = 0x4, fixed_abs, tag = 'smem constant byte address 0x4 - core index']
  #allocation1 [shape = 'u32[144,128]{1,0:T(1,128)}', space=vmem, size = 0x12000, scoped, tag = 'internal scratch']
  #allocation2 [shape = 'f32[1,1]{1,0:T(1,128)S(1)}', space=vmem, size = 0x200, scoped, tag = 'scoped memory for tpu_custom_call.1']
  %s0 = inlined_call_operand.vmem [shape: bf16[8,128], index: 0, kind: input, shape index: {}]
  %s1 = inlined_call_operand.vmem [shape: bf16[64,8], index: 1, kind: input, shape index: {}]
  %s2 = inlined_call_operand.vmem [shape: f32[64,1], index: 2, kind: input, shape index: {}]
  %s3 = inlined_call_operand.vmem [shape: bf16[32,64], index: 3, kind: input, shape index: {}]
  %s4 = inlined_call_operand.vmem [shape: f32[32,1], index: 4, kind: input, shape index: {}]
  %s5 = inlined_call_operand.vmem [shape: bf16[16,32], index: 5, kind: input, shape index: {}]
  %s6 = inlined_call_operand.vmem [shape: f32[16,1], index: 6, kind: input, shape index: {}]
  %s7 = inlined_call_operand.vmem [shape: f32[16,1], index: 7, kind: input, shape index: {}]
  %s8 = inlined_call_operand.<no memory space> [shape: f32[1,1], index: 8, kind: input, shape index: {}]
  %s9 = inlined_call_operand.hbm [shape: f32[1,128], index: 9, kind: output, shape index: {}]
  %s10 = sld [smem:[#allocation0]]
  $region46: #{tpu_custom_call.1} parent=0
    _
  %s12 = ssub.s32 1, %s10
  %s13 = scalar_select 0, %s12, %s10
  %v14 = vstv %s8
  %15 = vst [vmem:[#allocation2] sm:$0x1] %v14
  $region1: #{tpu_custom_call.1} parent=0
    #allocation3 [shape = 'u8[512]{0}', space=vmem, size = 0x400, scoped, tag = 'output window, operand 0, single buffered']
    #allocation4 [shape = 's32[1]{0}', space=sflag, size = 0x4, scoped, tag = 'scoped memory for tpu_custom_call.1']
    %16 = vsyncpa [#allocation4], 0
    // Predicated region
    $region2: #{tpu_custom_call.1} parent=1 // pred_check
      _
    $region3: #{tpu_custom_call.1} parent=1 // pred_check_branch
      %18 = sbr.rel (0) target = $region5
    $region4: #{tpu_custom_call.1} parent=1 // pred_region
      _
    $region5: #{tpu_custom_call.1} parent=1 // pred_fallthru
      _
    // Predicated region
    $region6: #{tpu_custom_call.1} parent=1 // pred_check
      _
    $region7: #{tpu_custom_call.1} parent=1 // pred_check_branch
      %20 = sbr.rel (0) target = $region9
    $region8: #{tpu_custom_call.1} parent=1 // pred_region
      _
    $region9: #{tpu_custom_call.1} parent=1 // pred_fallthru
      _
    // Predicated region
    $region10: #{tpu_custom_call.1} parent=1 // pred_check
      _
    $region11: #{tpu_custom_call.1} parent=1 // pred_check_branch
      %22 = sbr.rel (0) target = $region13
    $region12: #{tpu_custom_call.1} parent=1 // pred_region
      _
    $region13: #{tpu_custom_call.1} parent=1 // pred_fallthru
      _
    // Predicated region
    $region14: #{tpu_custom_call.1} parent=1 // pred_check
      _
    $region15: #{tpu_custom_call.1} parent=1 // pred_check_branch
      %24 = sbr.rel (0) target = $region17
    $region16: #{tpu_custom_call.1} parent=1 // pred_region
      _
    $region17: #{tpu_custom_call.1} parent=1 // pred_fallthru
      _
    // Predicated region
    $region18: #{tpu_custom_call.1} parent=1 // pred_check
      _
    $region19: #{tpu_custom_call.1} parent=1 // pred_check_branch
      %26 = sbr.rel (0) target = $region21
    $region20: #{tpu_custom_call.1} parent=1 // pred_region
      _
    $region21: #{tpu_custom_call.1} parent=1 // pred_fallthru
      _
    // Predicated region
    $region22: #{tpu_custom_call.1} parent=1 // pred_check
      _
    $region23: #{tpu_custom_call.1} parent=1 // pred_check_branch
      %28 = sbr.rel (0) target = $region25
    $region24: #{tpu_custom_call.1} parent=1 // pred_region
      _
    $region25: #{tpu_custom_call.1} parent=1 // pred_fallthru
      _
    // Predicated region
    $region26: #{tpu_custom_call.1} parent=1 // pred_check
      _
    $region27: #{tpu_custom_call.1} parent=1 // pred_check_branch
      %30 = sbr.rel (0) target = $region29
    $region28: #{tpu_custom_call.1} parent=1 // pred_region
      _
    $region29: #{tpu_custom_call.1} parent=1 // pred_fallthru
      _
    // Predicated region
    $region30: #{tpu_custom_call.1} parent=1 // pred_check
      _
    $region31: #{tpu_custom_call.1} parent=1 // pred_check_branch
      %32 = sbr.rel (0) target = $region33
    $region32: #{tpu_custom_call.1} parent=1 // pred_region
      _
    $region33: #{tpu_custom_call.1} parent=1 // pred_fallthru
      _
    // Predicated region
    $region34: #{tpu_custom_call.1} parent=1 // pred_check
      _
    $region35: #{tpu_custom_call.1} parent=1 // pred_check_branch
      %34 = sbr.rel (0) target = $region37
    $region36: #{tpu_custom_call.1} parent=1 // pred_region
      _
    $region37: #{tpu_custom_call.1} parent=1 // pred_fallthru
      _
    %v36 = vld [vmem:[%s0] sm:$0xf]
    %v37 = vld [vmem:[%s1] sm:$0xf]
    %v38 = vld [vmem:[%s1 + $0x4] sm:$0xf]
    %v39 = vld [vmem:[%s1 + $0x8] sm:$0xf]
    %v40 = vld [vmem:[%s1 + $0xc] sm:$0xf]
    %v41 = vld [vmem:[%s1 + $0x10] sm:$0xf]
    %v42 = vld [vmem:[%s1 + $0x14] sm:$0xf]
    %v43 = vld [vmem:[%s1 + $0x18] sm:$0xf]
    %v44 = vld [vmem:[%s1 + $0x1c] sm:$0xf]
    %v45 = vld [vmem:[%s2] sm:$0xff]
    %v46 = vld [vmem:[%s2 + $0x8] sm:$0xff]
    %v47 = vld [vmem:[%s2 + $0x10] sm:$0xff]
    %v48 = vld [vmem:[%s2 + $0x18] sm:$0xff]
    %v49 = vld [vmem:[%s2 + $0x20] sm:$0xff]
    %v50 = vld [vmem:[%s2 + $0x28] sm:$0xff]
    %v51 = vld [vmem:[%s2 + $0x30] sm:$0xff]
    %v52 = vld [vmem:[%s2 + $0x38] sm:$0xff]
    %54 = vset.pattern.permute.xlu0 0
    %55 = vperm.xlu0 %54, %v45
    %v56 = vpop.permute.xlu0 %55
    %59 = vset.pattern.permute.xlu0 0
    %60 = vperm.xlu0 %59, %v46
    %v61 = vpop.permute.xlu0 %60
    %64 = vset.pattern.permute.xlu0 0
    %65 = vperm.xlu0 %64, %v47
    %v66 = vpop.permute.xlu0 %65
    %69 = vset.pattern.permute.xlu0 0
    %70 = vperm.xlu0 %69, %v48
    %v71 = vpop.permute.xlu0 %70
    %74 = vset.pattern.permute.xlu0 0
    %75 = vperm.xlu0 %74, %v49
    %v76 = vpop.permute.xlu0 %75
    %79 = vset.pattern.permute.xlu0 0
    %80 = vperm.xlu0 %79, %v50
    %v81 = vpop.permute.xlu0 %80
    %84 = vset.pattern.permute.xlu0 0
    %85 = vperm.xlu0 %84, %v51
    %v86 = vpop.permute.xlu0 %85
    %89 = vset.pattern.permute.xlu0 0
    %90 = vperm.xlu0 %89, %v52
    %v91 = vpop.permute.xlu0 %90
    %v101 = vunpack.c.l.b16 %v37
    %v102 = vunpack.c.l.b16 %v38
    %v103 = vunpack.c.l.b16 %v39
    %v104 = vunpack.c.l.b16 %v40
    %v105 = vunpack.c.l.b16 %v41
    %v106 = vunpack.c.l.b16 %v42
    %v107 = vunpack.c.l.b16 %v43
    %v108 = vunpack.c.l.b16 %v44
    %v109 = vpack.c.b16 %v102, %v101
    %v110 = vpack.c.b16 %v104, %v103
    %v111 = vpack.c.b16 %v106, %v105
    %v112 = vpack.c.b16 %v108, %v107
    %vm113 = vcmask 64512
    %v115 = vsel %vm113, %v109, 0
    %v118 = vsel %vm113, %v110, 0
    %v121 = vsel %vm113, %v111, 0
    %v124 = vsel %vm113, %v112, 0
    %vm126 = vcmask 1043456
    %v128 = vsel %vm126, %v36, 0
    %130 = vmatprep.subr.bf16.mxu0 0
    %131 = vmatpush1.bf16.msra.mxu0 0
    %132 = vmatprep.subr.bf16.mxu0 0
    %133 = vmatpush1.bf16.msra.mxu0 0
    %134 = vmatprep.subr.bf16.mxu0 0
    %135 = vmatpush1.bf16.msra.mxu0 0
    %136 = vmatprep.subr.bf16.mxu0 0
    %137 = vmatpush1.bf16.msra.mxu0 0
    %138 = vmatprep.subr.bf16.mxu0 0
    %139 = vmatpush1.bf16.msra.mxu0 0
    %140 = vmatprep.subr.bf16.mxu0 0
    %141 = vmatpush1.bf16.msra.mxu0 0
    %142 = vmatprep.subr.bf16.mxu0 0
    %143 = vmatpush1.bf16.msra.mxu0 0
    %144 = vmatprep.subr.bf16.mxu0 0
    %145 = vmatpush1.bf16.msra.mxu0 %v128
    %146 = vmatprep.subr.bf16.mxu0 0
    %147 = vmatpush2.bf16.msra.mxu0 0
    %148 = vmatprep.subr.bf16.mxu0 0
    %149 = vmatpush2.bf16.msra.mxu0 0
    %150 = vmatprep.subr.bf16.mxu0 0
    %151 = vmatpush2.bf16.msra.mxu0 0
    %152 = vmatprep.subr.bf16.mxu0 0
    %153 = vmatpush2.bf16.msra.mxu0 0
    %154 = vmatprep.subr.bf16.mxu0 0
    %155 = vmatpush2.bf16.msra.mxu0 0
    %156 = vmatprep.subr.bf16.mxu0 0
    %157 = vmatpush2.bf16.msra.mxu0 0
    %158 = vmatprep.subr.bf16.mxu0 0
    %159 = vmatpush2.bf16.msra.mxu0 0
    %160 = vmatprep.subr.bf16.mxu0 0
    %161 = vmatpush2.bf16.msra.mxu0 0
    %162 = vmatprep.mubr.bf16.mxu0 0
    %163 = vmatmul.mubr.bf16.gmra.mxu0 %v115
    %v164 = vpop.f32.mrf.mxu0
    %v165 = vadd.f32 %v56, %v164
    %v166 = vpop.f32.mrf.mxu0
    %v167 = vpop.f32.mrf.mxu0
    %v168 = vadd.f32 %v61, %v167
    %v169 = vpop.f32.mrf.mxu0
    %170 = vmatprep.mubr.bf16.mxu0 0
    %171 = vmatmul.mubr.bf16.gmra.mxu0 %v118
    %v172 = vpop.f32.mrf.mxu0
    %v173 = vadd.f32 %v66, %v172
    %v174 = vpop.f32.mrf.mxu0
    %v175 = vpop.f32.mrf.mxu0
    %v176 = vadd.f32 %v71, %v175
    %v177 = vpop.f32.mrf.mxu0
    %178 = vmatprep.mubr.bf16.mxu0 0
    %179 = vmatmul.mubr.bf16.gmra.mxu0 %v121
    %v180 = vpop.f32.mrf.mxu0
    %v181 = vadd.f32 %v76, %v180
    %v182 = vpop.f32.mrf.mxu0
    %v183 = vpop.f32.mrf.mxu0
    %v184 = vadd.f32 %v81, %v183
    %v185 = vpop.f32.mrf.mxu0
    %186 = vmatprep.mubr.bf16.mxu0 0
    %187 = vmatmul.mubr.bf16.gmra.mxu0 %v124
    %v188 = vpop.f32.mrf.mxu0
    %v189 = vadd.f32 %v86, %v188
    %v190 = vpop.f32.mrf.mxu0
    %v191 = vpop.f32.mrf.mxu0
    %v192 = vadd.f32 %v91, %v191
    %v193 = vpop.f32.mrf.mxu0
    %194 = vdwg.mxu0
    %v195 = vmax.f32 %v165, 0.0
    %v196 = vmax.f32 %v168, 0.0
    %v197 = vmax.f32 %v173, 0.0
    %v198 = vmax.f32 %v176, 0.0
    %v199 = vmax.f32 %v181, 0.0
    %v200 = vmax.f32 %v184, 0.0
    %v201 = vmax.f32 %v189, 0.0
    %v202 = vmax.f32 %v192, 0.0
    %v203 = vld [vmem:[%s3] sm:$0xf]
    %v204 = vld [vmem:[%s3 + $0x4] sm:$0xf]
    %v205 = vld [vmem:[%s3 + $0x8] sm:$0xf]
    %v206 = vld [vmem:[%s3 + $0xc] sm:$0xf]
    %v207 = vpack.c.bf16 %v196, %v195
    %v208 = vpack.c.bf16 %v198, %v197
    %v209 = vpack.c.bf16 %v200, %v199
    %v210 = vpack.c.bf16 %v202, %v201
    %v211 = vld [vmem:[%s4] sm:$0xff]
    %v212 = vld [vmem:[%s4 + $0x8] sm:$0xff]
    %v213 = vld [vmem:[%s4 + $0x10] sm:$0xff]
    %v214 = vld [vmem:[%s4 + $0x18] sm:$0xff]
    %216 = vset.pattern.permute.xlu0 0
    %217 = vperm.xlu0 %216, %v211
    %v218 = vpop.permute.xlu0 %217
    %221 = vset.pattern.permute.xlu0 0
    %222 = vperm.xlu0 %221, %v212
    %v223 = vpop.permute.xlu0 %222
    %226 = vset.pattern.permute.xlu0 0
    %227 = vperm.xlu0 %226, %v213
    %v228 = vpop.permute.xlu0 %227
    %231 = vset.pattern.permute.xlu0 0
    %232 = vperm.xlu0 %231, %v214
    %v233 = vpop.permute.xlu0 %232
    %v239 = vunpack.c.l.b16 %v203
    %v240 = vunpack.c.l.b16 %v204
    %v241 = vunpack.c.l.b16 %v205
    %v242 = vunpack.c.l.b16 %v206
    %v243 = vpack.c.b16 %v240, %v239
    %v244 = vpack.c.b16 %v242, %v241
    %vm245 = vcmask 523264
    %v247 = vsel %vm245, %v243, 0
    %v250 = vsel %vm245, %v244, 0
    %252 = vmatprep.subr.bf16.mxu0 0
    %253 = vmatpush1.bf16.msra.mxu0 0
    %254 = vmatprep.subr.bf16.mxu0 0
    %255 = vmatpush1.bf16.msra.mxu0 0
    %256 = vmatprep.subr.bf16.mxu0 0
    %257 = vmatpush1.bf16.msra.mxu0 0
    %258 = vmatprep.subr.bf16.mxu0 0
    %259 = vmatpush1.bf16.msra.mxu0 0
    %260 = vmatprep.subr.bf16.mxu0 0
    %261 = vmatpush1.bf16.msra.mxu0 %v210
    %262 = vmatprep.subr.bf16.mxu0 0
    %263 = vmatpush1.bf16.msra.mxu0 %v209
    %264 = vmatprep.subr.bf16.mxu0 0
    %265 = vmatpush1.bf16.msra.mxu0 %v208
    %266 = vmatprep.subr.bf16.mxu0 0
    %267 = vmatpush1.bf16.msra.mxu0 %v207
    %268 = vmatprep.subr.bf16.mxu0 0
    %269 = vmatpush2.bf16.msra.mxu0 0
    %270 = vmatprep.subr.bf16.mxu0 0
    %271 = vmatpush2.bf16.msra.mxu0 0
    %272 = vmatprep.subr.bf16.mxu0 0
    %273 = vmatpush2.bf16.msra.mxu0 0
    %274 = vmatprep.subr.bf16.mxu0 0
    %275 = vmatpush2.bf16.msra.mxu0 0
    %276 = vmatprep.subr.bf16.mxu0 0
    %277 = vmatpush2.bf16.msra.mxu0 0
    %278 = vmatprep.subr.bf16.mxu0 0
    %279 = vmatpush2.bf16.msra.mxu0 0
    %280 = vmatprep.subr.bf16.mxu0 0
    %281 = vmatpush2.bf16.msra.mxu0 0
    %282 = vmatprep.subr.bf16.mxu0 0
    %283 = vmatpush2.bf16.msra.mxu0 0
    %284 = vmatprep.mubr.bf16.mxu0 0
    %285 = vmatmul.mubr.bf16.gmra.mxu0 %v247
    %v286 = vpop.f32.mrf.mxu0
    %v287 = vadd.f32 %v218, %v286
    %v288 = vpop.f32.mrf.mxu0
    %v289 = vpop.f32.mrf.mxu0
    %v290 = vadd.f32 %v223, %v289
    %v291 = vpop.f32.mrf.mxu0
    %292 = vmatprep.mubr.bf16.mxu0 0
    %293 = vmatmul.mubr.bf16.gmra.mxu0 %v250
    %v294 = vpop.f32.mrf.mxu0
    %v295 = vadd.f32 %v228, %v294
    %v296 = vpop.f32.mrf.mxu0
    %v297 = vpop.f32.mrf.mxu0
    %v298 = vadd.f32 %v233, %v297
    %v299 = vpop.f32.mrf.mxu0
    %300 = vdwg.mxu0
    %v301 = vmax.f32 %v287, 0.0
    %v302 = vmax.f32 %v290, 0.0
    %v303 = vmax.f32 %v295, 0.0
    %v304 = vmax.f32 %v298, 0.0
    %v305 = vld [vmem:[%s5] sm:$0xf]
    %v306 = vld [vmem:[%s5 + $0x4] sm:$0xf]
    %v307 = vpack.c.bf16 %v302, %v301
    %v308 = vpack.c.bf16 %v304, %v303
    %v309 = vld [vmem:[%s6] sm:$0xff]
    %v310 = vld [vmem:[%s6 + $0x8] sm:$0xff]
    %312 = vset.pattern.permute.xlu0 0
    %313 = vperm.xlu0 %312, %v309
    %v314 = vpop.permute.xlu0 %313
    %317 = vset.pattern.permute.xlu0 0
    %318 = vperm.xlu0 %317, %v310
    %v319 = vpop.permute.xlu0 %318
    %v323 = vunpack.c.l.b16 %v305
    %v324 = vunpack.c.l.b16 %v306
    %v325 = vpack.c.b16 %v324, %v323
    %vm326 = vcmask 261120
    %v328 = vsel %vm326, %v325, 0
    %330 = vmatprep.subr.bf16.mxu0 0
    %331 = vmatpush1.bf16.msra.mxu0 0
    %332 = vmatprep.subr.bf16.mxu0 0
    %333 = vmatpush1.bf16.msra.mxu0 0
    %334 = vmatprep.subr.bf16.mxu0 0
    %335 = vmatpush1.bf16.msra.mxu0 0
    %336 = vmatprep.subr.bf16.mxu0 0
    %337 = vmatpush1.bf16.msra.mxu0 0
    %338 = vmatprep.subr.bf16.mxu0 0
    %339 = vmatpush1.bf16.msra.mxu0 0
    %340 = vmatprep.subr.bf16.mxu0 0
    %341 = vmatpush1.bf16.msra.mxu0 0
    %342 = vmatprep.subr.bf16.mxu0 0
    %343 = vmatpush1.bf16.msra.mxu0 %v308
    %344 = vmatprep.subr.bf16.mxu0 0
    %345 = vmatpush1.bf16.msra.mxu0 %v307
    %346 = vmatprep.subr.bf16.mxu0 0
    %347 = vmatpush2.bf16.msra.mxu0 0
    %348 = vmatprep.subr.bf16.mxu0 0
    %349 = vmatpush2.bf16.msra.mxu0 0
    %350 = vmatprep.subr.bf16.mxu0 0
    %351 = vmatpush2.bf16.msra.mxu0 0
    %352 = vmatprep.subr.bf16.mxu0 0
    %353 = vmatpush2.bf16.msra.mxu0 0
    %354 = vmatprep.subr.bf16.mxu0 0
    %355 = vmatpush2.bf16.msra.mxu0 0
    %356 = vmatprep.subr.bf16.mxu0 0
    %357 = vmatpush2.bf16.msra.mxu0 0
    %358 = vmatprep.subr.bf16.mxu0 0
    %359 = vmatpush2.bf16.msra.mxu0 0
    %360 = vmatprep.subr.bf16.mxu0 0
    %361 = vmatpush2.bf16.msra.mxu0 0
    %362 = vmatprep.mubr.bf16.mxu0 0
    %363 = vmatmul.mubr.bf16.gmra.mxu0 %v328
    %v364 = vpop.f32.mrf.mxu0
    %v365 = vadd.f32 %v314, %v364
    %v366 = vpop.f32.mrf.mxu0
    %v367 = vpop.f32.mrf.mxu0
    %v368 = vadd.f32 %v319, %v367
    %v369 = vpop.f32.mrf.mxu0
    %370 = vdwg.mxu0
    %v371 = vmax.f32 %v365, 0.0
    %v372 = vmax.f32 %v368, 0.0
    %v373 = vld [vmem:[%s7] sm:$0xff]
    %v374 = vld [vmem:[%s7 + $0x8] sm:$0xff]
    %376 = vset.pattern.permute.xlu0 0
    %377 = vperm.xlu0 %376, %v373
    %v378 = vpop.permute.xlu0 %377
    %381 = vset.pattern.permute.xlu0 0
    %382 = vperm.xlu0 %381, %v374
    %v383 = vpop.permute.xlu0 %382
    %v385 = vmul.f32 %v378, %v371
    %v386 = vmul.f32 %v383, %v372
    %v387 = vadd.f32 %v385, %v386
    %v388 = vrot.slane %v387, 4
    %v389 = vadd.f32 %v387, %v388
    %v390 = vrot.slane %v389, 2
    %v391 = vadd.f32 %v389, %v390
    %v392 = vrot.slane %v391, 1
    %v393 = vadd.f32 %v391, %v392
    %v394 = vld [vmem:[#allocation2] sm:$0x1]
    %396 = vset.pattern.permute.xlu0 0
    %397 = vperm.xlu0 %396, %v394
    %v398 = vpop.permute.xlu0 %397
    %v400 = vlaneseq
    %v401 = vshrl.u32 %v400, 7
    %v402 = vsub.s32 0, %v401
    %v403 = vrot.slane %v398, %v402
    %v404 = vadd.f32 %v393, %v403
    %405 = vst [vmem:[#allocation3] sm:$0x1] %v404
    // Predicated region
    $region38: #{tpu_custom_call.1} parent=1 // pred_check
      _
    $region39: #{tpu_custom_call.1} parent=1 // pred_check_branch
      %407 = sbr.rel (0) target = $region41
    $region40: #{tpu_custom_call.1} parent=1 // pred_region
      %s409 = ssub.s32 16, 16
      %410 = vsyncadd [#allocation4], %s409
      %s412 = sshll.u32 [#allocation3], 4
      %s413 = int_to_ptr.vmem [resolvable:$true] %s412
      %415 = dma.vmem_to_hbm [thread:$0]  %s413, 16, %s9, [#allocation4]
    $region41: #{tpu_custom_call.1} parent=1 // pred_fallthru
      _
    // Predicated region
    $region42: #{tpu_custom_call.1} parent=1 // pred_check
      _
    $region43: #{tpu_custom_call.1} parent=1 // pred_check_branch
      %417 = sbr.rel (0) target = $region45
    $region44: #{tpu_custom_call.1} parent=1 // pred_region
      %418 = dma.done [#allocation4], 16
    $region45: #{tpu_custom_call.1} parent=1 // pred_fallthru
      _
    %419 = vsyncpa [#allocation4], 1

</llo_original>
